<compile_context>
chip_gen: v7x
topology: tpu7x:2x2x1
jax: 0.10.0
libtpu: 0.0.40
codegen_flags: <defaults>
</compile_context>

<pallas_src>
import functools

import jax
import jax.numpy as jnp
from jax.experimental import pallas as pl
from jax.experimental.pallas import tpu as pltpu

DEGREE = 2  # polynomial kernel degree; MUST stay a compile-time Python int


def _round_up(x: int, m: int) -> int:
    return ((x + m - 1) // m) * m


def _cdiv(a: int, b: int) -> int:
    return -(-a // b)


def _vmem_budget_bytes() -> int:
    """~80% of physical VMEM (Mosaic scratch / double-buffer headroom)."""
    cap = 64 << 20  # safe lower bound across v5e/v6e/v7x
    try:
        info = pltpu.get_tpu_info()
        cap = int(getattr(info, "vmem_capacity_bytes", cap))
    except Exception:
        pass
    return max(int(cap * 0.8), 32 << 20)


def _num_tensorcores() -> int:
    """2 TensorCores per chip on v7x-class parts, 1 on v5e/v6e."""
    try:
        kind = (getattr(jax.devices()[0], "device_kind", "") or "").lower()
    except Exception:
        kind = ""
    return 2 if ("v7" in kind or "7x" in kind) else 1


def _choose_row_tile(N, D, s_out, x_itemsize, out_itemsize, sp_itemsize,
                     s_pad, vmem_budget, num_cores):
    # Per-row VMEM footprint incl. (8,128) lane-layout padding; in/out double-buffered.
    d_lanes = _round_up(D, 128)
    s_lanes = _round_up(s_out, 128)
    row_vmem = 2 * d_lanes * x_itemsize + 2 * s_lanes * out_itemsize
    # Resident sparse block (constant index_map -> fetched once, counted once).
    sp_vmem = _round_up(D, 8) * _round_up(s_pad, 128) * sp_itemsize
    tile_budget = max(vmem_budget - sp_vmem - (4 << 20), 1 << 20)
    tn_cap = max(8, (tile_budget // row_vmem) // 8 * 8)

    # Target ~4 MiB of raw X+out HBM traffic per grid step (amortize ~0.35 us/step).
    raw_row = D * x_itemsize + s_out * out_itemsize
    tn_target = _round_up(max(256, min(8192, (4 << 20) // max(raw_row, 1))), 8)

    tn = min(tn_cap, tn_target, _round_up(N, 8))
    if num_cores > 1 and N > 4 * 8:
        # >= ~2 grid steps per TensorCore on megacore parts, when N allows.
        tn = min(tn, max(8, _round_up(_cdiv(N, 4), 8)))
    tn = max(8, tn)
    if N < 8:
        tn = N  # block dim must be a multiple of 8 or equal the full array dim
    return tn


def _kernel_body(x_ref, spt_ref, out_ref, *, s_out: int):
    # x_ref  : (tn, D)      row tile of descriptors
    # spt_ref: (D, S_pad)   pre-transposed sparse points (resident across grid)
    # out_ref: (tn, s_out)  true-width output tile (lane-masked store when s_out<128)
    k = jax.lax.dot_general(
        x_ref[...],
        spt_ref[...],
        dimension_numbers=(((1,), (0,)), ((), ())),  # X @ M.T (RHS already (K, N))
        preferred_element_type=jnp.float32,
    )
    if DEGREE == 2:
        p = k * k                            # exact VPU multiply, hidden under matmul
    else:
        p = jax.lax.integer_pow(k, DEGREE)   # static int only; never exp/log on EUP
    out_ref[...] = p[:, :s_out].astype(out_ref.dtype)


def _pallas_poly_kernel(x, sp_t, s_out, *, row_tile=None):
    """(x @ sp.T) ** DEGREE with sp pre-transposed/padded to (D, S_pad), S_pad % 128 == 0.

    Output has the TRUE width `s_out` (no padded writeback, no post-slice copy).
    """
    N, D = x.shape
    D2, s_pad = sp_t.shape
    assert D == D2, "feature dims must match"
    assert s_pad % 128 == 0, "sparse-point axis must be pre-padded to a multiple of 128"
    assert s_out <= s_pad

    out_dtype = jnp.float32
    x_it = jnp.dtype(x.dtype).itemsize
    sp_it = jnp.dtype(sp_t.dtype).itemsize
    out_it = jnp.dtype(out_dtype).itemsize

    vmem_budget = _vmem_budget_bytes()
    num_cores = _num_tensorcores()

    if row_tile is None:
        tn = _choose_row_tile(N, D, s_out, x_it, out_it, sp_it, s_pad,
                              vmem_budget, num_cores)
    else:
        tn = max(8, min(_round_up(row_tile, 8), _round_up(N, 8)))
        if N < 8:
            tn = N

    # cdiv grid; the partial last block is edge-masked by Pallas (no jnp.pad / out[:N]
    # wrapper copies). Safe: rows are independent and OOB output rows are never stored.
    grid = (_cdiv(N, tn),)

    kernel = functools.partial(_kernel_body, s_out=s_out)
    return pl.pallas_call(
        kernel,
        out_shape=jax.ShapeDtypeStruct((N, s_out), out_dtype),
        grid_spec=pltpu.PrefetchScalarGridSpec(
            num_scalar_prefetch=0,
            grid=grid,
            in_specs=[
                pl.BlockSpec((tn, D), lambda i: (i, 0)),     # row tile of X
                pl.BlockSpec((D, s_pad), lambda i: (0, 0)),  # full sparse block, resident
            ],
            out_specs=pl.BlockSpec((tn, s_out), lambda i: (i, 0)),
        ),
        compiler_params=pltpu.CompilerParams(
            dimension_semantics=("parallel",),
            vmem_limit_bytes=vmem_budget,
        ),
    )(x, sp_t)


class KernelCalculator:
    """JAX/Pallas port of the PyTorch KernelCalculator module.

    forward(descriptor_vector) = kernel_fn(descriptor_vector, sparse_points)
    """

    def __init__(self, sparse_points, *, row_tile=None, cast_to_bf16: bool = True):
        sparse_points = jnp.asarray(sparse_points, jnp.float32)
        S, D = sparse_points.shape
        self.sparse_points = sparse_points
        self._S = S
        self._row_tile = row_tile
        self._fwd_dtype = jnp.bfloat16 if cast_to_bf16 else jnp.float32

        # Pad S to a multiple of 128 for the resident RHS block and pre-transpose ONCE
        # to MXU-native (D, S_pad); the OUTPUT is written at the true S width.
        S_pad = _round_up(S, 128)
        sp_pad = jnp.pad(sparse_points, ((0, S_pad - S), (0, 0)))
        sp_t_f32 = jnp.transpose(sp_pad)                 # (D, S_pad), f32
        self._sp_t = sp_t_f32.astype(self._fwd_dtype)    # forward-pass RHS

        # Mirror __init__: k_mm = kernel_fn(sparse_points, sparse_points).
        # Kept in f32: it feeds the (host-side) SoR solver eigendecomposition.
        self.k_mm = _pallas_poly_kernel(sparse_points, sp_t_f32, S, row_tile=row_tile)
        # TODO(synk): _SorKernelSolver (scipy.linalg.eigh / QR) is host-side, init-time
        #             linear algebra and not part of forward(); it is not lowered to Pallas.

    def forward(self, descriptor_vector) -> jnp.ndarray:
        x = jnp.asarray(descriptor_vector, self._fwd_dtype)
        return _pallas_poly_kernel(x, self._sp_t, self._S, row_tile=self._row_tile)

    __call__ = forward


if __name__ == "__main__":
    key = jax.random.PRNGKey(0)
    k_sp, k_x = jax.random.split(key)

    N, S, D = 64, 16, 32  # samples, sparse points, feature dim
    sparse_points = jax.random.normal(k_sp, (S, D), dtype=jnp.float32)
    descriptor_vector = jax.random.normal(k_x, (N, D), dtype=jnp.float32)

    calc = KernelCalculator(sparse_points)
    out = jax.block_until_ready(calc(descriptor_vector))

    # correctness checks against plain-JAX references
    # forward() reads bf16 by default -> compare at matching input precision
    xr = descriptor_vector.astype(calc._fwd_dtype).astype(jnp.float32)
    spr = sparse_points.astype(calc._fwd_dtype).astype(jnp.float32)
    ref = (xr @ spr.T) ** DEGREE
    assert out.shape == (N, S), out.shape
    assert jnp.allclose(out, ref, atol=1e-3, rtol=1e-3), "forward mismatch vs reference"

    # k_mm path is kept f32
    ref_mm = (sparse_points @ sparse_points.T) ** DEGREE
    assert calc.k_mm.shape == (S, S)
    assert jnp.allclose(calc.k_mm, ref_mm, atol=1e-4, rtol=1e-4), "k_mm mismatch vs reference"

    print("KERNEL_OK")
</pallas_src>

<mosaic_0001>
module attributes {stable_mosaic.version = 11 : i64} {
  func.func @_kernel_body(%arg0: i32, %arg1: memref<16x32xf32, #tpu.memory_space<vmem>>, %arg2: memref<32x128xf32, #tpu.memory_space<vmem>>, %arg3: memref<16x16xf32, #tpu.memory_space<vmem>>) attributes {dimension_semantics = [#tpu.dimension_semantics<parallel>], iteration_bounds = array<i64: 1>, scalar_prefetch = 0 : i64, scratch_operands = 0 : i64, tpu.core_type = #tpu.core_type<tc>, window_params = [{transform_indices = @transform_0, window_bounds = array<i64: 16, 32>}, {pipeline_mode = #tpu.pipeline_mode<synchronous>, transform_indices = @transform_1, window_bounds = array<i64: 32, 128>}, {transform_indices = @transform_2, window_bounds = array<i64: 16, 16>}]} {
    %c0 = arith.constant 0 : index
    %c0_0 = arith.constant 0 : index
    %0 = vector.load %arg1[%c0, %c0_0] : memref<16x32xf32, #tpu.memory_space<vmem>>, vector<16x32xf32>
    %c0_1 = arith.constant 0 : index
    %c0_2 = arith.constant 0 : index
    %1 = vector.load %arg2[%c0_1, %c0_2] : memref<32x128xf32, #tpu.memory_space<vmem>>, vector<32x128xf32>
    %cst = arith.constant dense<0.000000e+00> : vector<16x128xf32>
    %2 = tpu.matmul %0, %1, %cst {dimension_numbers = #tpu.dot_dimension_numbers<[1], [0], [0], [1], [0, 0, 1, 1], [], []>} : vector<16x32xf32>, vector<32x128xf32>, vector<16x128xf32> -> vector<16x128xf32>
    %3 = arith.mulf %2, %2 : vector<16x128xf32>
    %4 = vector.extract_strided_slice %3 {offsets = [0, 0], sizes = [16, 16], strides = [1, 1]} : vector<16x128xf32> to vector<16x16xf32>
    %c0_3 = arith.constant 0 : index
    %c0_4 = arith.constant 0 : index
    %5 = vector.load %arg3[%c0_3, %c0_4] : memref<16x16xf32, #tpu.memory_space<vmem>>, vector<16x16xf32>
    tpu.vector_store %arg3[%c0_3, %c0_4], %4 {strides = array<i32>} : memref<16x16xf32, #tpu.memory_space<vmem>>, vector<16x16xf32>,
    return
  }
  func.func @transform_0(%arg0: i32) -> (i32, i32) {
    %c0_i32 = arith.constant 0 : i32
    %c0_i32_0 = arith.constant 0 : i32
    return %arg0, %c0_i32 : i32, i32
  }
  func.func @transform_1(%arg0: i32) -> (i32, i32) {
    %c0_i32 = arith.constant 0 : i32
    %c0_i32_0 = arith.constant 0 : i32
    %c0_i32_1 = arith.constant 0 : i32
    return %c0_i32, %c0_i32_0 : i32, i32
  }
  func.func @transform_2(%arg0: i32) -> (i32, i32) {
    %c0_i32 = arith.constant 0 : i32
    %c0_i32_0 = arith.constant 0 : i32
    return %arg0, %c0_i32 : i32, i32
  }
}

</mosaic_0001>

<llo_original>
// kernel: tpu_custom_call.1
$region0: #{tpu_custom_call.1}
  #allocation0 [shape = 'u32[]', space=smem, size = 0x4, offset = 0x4, fixed_abs, tag = 'smem constant byte address 0x4 - core index']
  #allocation1 [shape = 'u32[144,128]{1,0:T(1,128)}', space=vmem, size = 0x12000, scoped, tag = 'internal scratch']
  %s0 = inlined_call_operand.hbm [shape: f32[16,32], index: 0, kind: input, shape index: {}]
  %s1 = inlined_call_operand.hbm [shape: f32[32,128], index: 1, kind: input, shape index: {}]
  %s2 = inlined_call_operand.hbm [shape: f32[16,16], index: 2, kind: output, shape index: {}]
  %s3 = sld [smem:[#allocation0]]
  $region26: #{tpu_custom_call.1} parent=0
    _
  %s5 = ssub.s32 1, %s3
  %s6 = scalar_select 0, %s5, %s3
  $region1: #{tpu_custom_call.1} parent=0
    #allocation2 [shape = 'u8[8192]{0}', space=vmem, size = 0x2000, scoped, tag = 'input window, operand 0, single buffered']
    #allocation3 [shape = 's32[1]{0}', space=sflag, size = 0x4, scoped, tag = 'scoped memory for tpu_custom_call.1']
    #allocation4 [shape = 's32[1]{0}', space=sflag, size = 0x4, scoped, tag = 'scoped memory for tpu_custom_call.1']
    #allocation5 [shape = 'u8[16384]{0}', space=vmem, size = 0x4000, scoped, tag = 'input window, operand 1, single buffered']
    #allocation6 [shape = 's32[1]{0}', space=sflag, size = 0x4, scoped, tag = 'scoped memory for tpu_custom_call.1']
    #allocation7 [shape = 'u8[8192]{0}', space=vmem, size = 0x2000, scoped, tag = 'output window, operand 0, single buffered']
    %7 = vsyncpa [#allocation3], 0
    %8 = vsyncpa [#allocation6], 0
    %9 = vsyncpa [#allocation4], 0
    // Predicated region
    $region2: #{tpu_custom_call.1} parent=1 // pred_check
      _
    $region3: #{tpu_custom_call.1} parent=1 // pred_check_branch
      %11 = sbr.rel (0) target = $region5
    $region4: #{tpu_custom_call.1} parent=1 // pred_region
      %s13 = ssub.s32 256, 256
      %14 = vsyncadd [#allocation3], %s13
      %s15 = sshll.u32 [#allocation2], 4
      %s16 = int_to_ptr.vmem [resolvable:$true] %s15
      %21 = dma.hbm_to_vmem [thread:$0]  %s0, 256, %s16, [#allocation3], 128, 128, 8
    $region5: #{tpu_custom_call.1} parent=1 // pred_fallthru
      _
    // Predicated region
    $region6: #{tpu_custom_call.1} parent=1 // pred_check
      _
    $region7: #{tpu_custom_call.1} parent=1 // pred_check_branch
      %23 = sbr.rel (0) target = $region9
    $region8: #{tpu_custom_call.1} parent=1 // pred_region
      %s25 = ssub.s32 512, 512
      %26 = vsyncadd [#allocation6], %s25
      %s27 = sshll.u32 [#allocation5], 4
      %s28 = int_to_ptr.vmem [resolvable:$true] %s27
      %33 = dma.hbm_to_vmem [thread:$0]  %s1, 512, %s28, [#allocation6], 128, 128, 8
    $region9: #{tpu_custom_call.1} parent=1 // pred_fallthru
      _
    // Predicated region
    $region10: #{tpu_custom_call.1} parent=1 // pred_check
      _
    $region11: #{tpu_custom_call.1} parent=1 // pred_check_branch
      %35 = sbr.rel (0) target = $region13
    $region12: #{tpu_custom_call.1} parent=1 // pred_region
      %36 = dma.done [#allocation3], 256
    $region13: #{tpu_custom_call.1} parent=1 // pred_fallthru
      _
    // Predicated region
    $region14: #{tpu_custom_call.1} parent=1 // pred_check
      _
    $region15: #{tpu_custom_call.1} parent=1 // pred_check_branch
      %38 = sbr.rel (0) target = $region17
    $region16: #{tpu_custom_call.1} parent=1 // pred_region
      %39 = dma.done [#allocation6], 512
    $region17: #{tpu_custom_call.1} parent=1 // pred_fallthru
      _
    %v40 = vld [vmem:[#allocation2] sm:$0xff]
    %v41 = vld [vmem:[#allocation2 + $0x8] sm:$0xff]
    %v42 = vld [vmem:[#allocation5] sm:$0xff]
    %v43 = vld [vmem:[#allocation5 + $0x8] sm:$0xff]
    %v44 = vld [vmem:[#allocation5 + $0x10] sm:$0xff]
    %v45 = vld [vmem:[#allocation5 + $0x18] sm:$0xff]
    %vm46 = vcmask 261120
    %v48 = vsel %vm46, %v40, 0
    %v51 = vsel %vm46, %v41, 0
    %53 = vmatprep.subr.mxu0 0.0
    %54 = vmatpush1.msra.mxu0 %v42
    %55 = vmatprep.subr.mxu0 0.0
    %56 = vmatpush1.msra.mxu0 %v43
    %57 = vmatprep.subr.mxu0 0.0
    %58 = vmatpush1.msra.mxu0 %v44
    %59 = vmatprep.subr.mxu0 0.0
    %60 = vmatpush1.msra.mxu0 %v45
    %61 = vmatprep.subr.mxu0 0.0
    %62 = vmatpush1.msra.mxu0 0.0
    %63 = vmatprep.subr.mxu0 0.0
    %64 = vmatpush1.msra.mxu0 0.0
    %65 = vmatprep.subr.mxu0 0.0
    %66 = vmatpush1.msra.mxu0 0.0
    %67 = vmatprep.subr.mxu0 0.0
    %68 = vmatpush1.msra.mxu0 0.0
    %69 = vmatprep.subr.mxu0 0.0
    %70 = vmatpush1.msra.mxu0 0.0
    %71 = vmatprep.subr.mxu0 0.0
    %72 = vmatpush1.msra.mxu0 0.0
    %73 = vmatprep.subr.mxu0 0.0
    %74 = vmatpush1.msra.mxu0 0.0
    %75 = vmatprep.subr.mxu0 0.0
    %76 = vmatpush1.msra.mxu0 0.0
    %77 = vmatprep.subr.mxu0 0.0
    %78 = vmatpush1.msra.mxu0 0.0
    %79 = vmatprep.subr.mxu0 0.0
    %80 = vmatpush1.msra.mxu0 0.0
    %81 = vmatprep.subr.mxu0 0.0
    %82 = vmatpush1.msra.mxu0 0.0
    %83 = vmatprep.subr.mxu0 0.0
    %84 = vmatpush1.msra.mxu0 0.0
    %85 = vmatprep.subr.mxu0 0.0
    %86 = vmatpush1.msra.mxu0 0.0
    %87 = vmatprep.subr.mxu0 0.0
    %88 = vmatpush1.msra.mxu0 0.0
    %89 = vmatprep.subr.mxu0 0.0
    %90 = vmatpush1.msra.mxu0 0.0
    %91 = vmatprep.subr.mxu0 0.0
    %92 = vmatpush1.msra.mxu0 0.0
    %93 = vmatprep.subr.mxu0 0.0
    %94 = vmatpush1.msra.mxu0 0.0
    %95 = vmatprep.subr.mxu0 0.0
    %96 = vmatpush1.msra.mxu0 0.0
    %97 = vmatprep.subr.mxu0 0.0
    %98 = vmatpush1.msra.mxu0 0.0
    %99 = vmatprep.subr.mxu0 0.0
    %100 = vmatpush1.msra.mxu0 0.0
    %101 = vmatprep.subr.mxu0 0.0
    %102 = vmatpush1.msra.mxu0 0.0
    %103 = vmatprep.subr.mxu0 0.0
    %104 = vmatpush1.msra.mxu0 0.0
    %105 = vmatprep.subr.mxu0 0.0
    %106 = vmatpush1.msra.mxu0 0.0
    %107 = vmatprep.subr.mxu0 0.0
    %108 = vmatpush1.msra.mxu0 0.0
    %109 = vmatprep.subr.mxu0 0.0
    %110 = vmatpush1.msra.mxu0 0.0
    %111 = vmatprep.subr.mxu0 0.0
    %112 = vmatpush1.msra.mxu0 0.0
    %113 = vmatprep.subr.mxu0 0.0
    %114 = vmatpush1.msra.mxu0 0.0
    %115 = vmatprep.subr.mxu0 0.0
    %116 = vmatpush1.msra.mxu0 0.0
    %117 = vmatprep.mubr.f32.mxu0 0.0
    %118 = vmatmul.mubr.f32.gmra.mrb[0].mxu0 %v48
    %v119 = vpop.f32.mrb[0].mxu0
    %v120 = vadd.f32 0.0, %v119
    %v121 = vpop.f32.mrb[0].mxu0
    %122 = vmatprep.mubr.f32.mxu0 0.0
    %123 = vmatmul.mubr.f32.gmra.mrb[0].mxu0 %v51
    %v124 = vpop.f32.mrb[0].mxu0
    %v125 = vadd.f32 0.0, %v124
    %v126 = vpop.f32.mrb[0].mxu0
    %127 = vdwg.mxu0
    %v128 = vmul.f32 %v120, %v120
    %v129 = vmul.f32 %v125, %v125
    %vm130 = vcmask 130048
    %131 = vst.msk [vmem:[#allocation7] sm:$0xff] %vm130, %v128
    %132 = vst.msk [vmem:[#allocation7 + $0x8] sm:$0xff] %vm130, %v129
    // Predicated region
    $region18: #{tpu_custom_call.1} parent=1 // pred_check
      _
    $region19: #{tpu_custom_call.1} parent=1 // pred_check_branch
      %134 = sbr.rel (0) target = $region21
    $region20: #{tpu_custom_call.1} parent=1 // pred_region
      %s136 = ssub.s32 256, 256
      %137 = vsyncadd [#allocation4], %s136
      %s138 = sshll.u32 [#allocation7], 4
      %s139 = int_to_ptr.vmem [resolvable:$true] %s138
      %144 = dma.vmem_to_hbm [thread:$0]  %s139, 256, %s2, [#allocation4], 128, 128, 8
    $region21: #{tpu_custom_call.1} parent=1 // pred_fallthru
      _
    // Predicated region
    $region22: #{tpu_custom_call.1} parent=1 // pred_check
      _
    $region23: #{tpu_custom_call.1} parent=1 // pred_check_branch
      %146 = sbr.rel (0) target = $region25
    $region24: #{tpu_custom_call.1} parent=1 // pred_region
      %147 = dma.done [#allocation4], 256
    $region25: #{tpu_custom_call.1} parent=1 // pred_fallthru
      _
    %148 = vsyncpa [#allocation3], 1
    %149 = vsyncpa [#allocation6], 1
    %150 = vsyncpa [#allocation4], 1

</llo_original>
